<compile_context>
chip_gen: v7x
topology: tpu7x:2x2x1
jax: 0.10.0
libtpu: 0.0.40
codegen_flags: <defaults>
</compile_context>

<pallas_src>
import jax
import jax.numpy as jnp
from jax.experimental import pallas as pl
from jax.experimental.pallas import tpu as pltpu


def _attention_block_kernel(x_ref, w_ref, b_ref, o_ref):
    # x_ref : (1, C, TILE_SUB, 128) VMEM block (spatial dense on sublanes+lanes)
    # w_ref : (C, C) SMEM  f32 conv weight [c_out, c_in]
    # b_ref : (C,)   SMEM  f32 conv bias
    # o_ref : (1, C, TILE_SUB, 128) VMEM block
    C = x_ref.shape[1]

    # Per-channel dense (TILE_SUB, 128) slabs.  Loaded once; channel mix and
    # sigmoid stay in f32, the final gating multiply runs in the I/O dtype
    # (so bf16 inputs never materialize a full-tile f32 copy).
    xs = [x_ref[0, ci] for ci in range(C)]

    for co in range(C):                               # static unroll (C small)
        acc = xs[0].astype(jnp.float32) * w_ref[co, 0]
        for ci in range(1, C):
            acc = acc + xs[ci].astype(jnp.float32) * w_ref[co, ci]
        acc = acc + b_ref[co]
        gate = jax.nn.sigmoid(acc)                    # EUP exp + VPU, f32
        # Direct per-channel store: no concat, no extra VMEM temp tile.
        o_ref[0, co] = xs[co] * gate.astype(o_ref.dtype)


def _choose_tile_sub(N, R, C, itemsize, target_block_bytes):
    """Sublane-axis tile (rows of 128 lanes): a multiple of 8, or the full dim R."""
    if R <= 8:
        return R                                        # full-dim block is legal
    per_row_bytes = C * 128 * itemsize
    cap = max(8, (target_block_bytes // per_row_bytes) // 8 * 8)
    tile = R if R <= cap else cap
    # Keep at least ~4 grid steps so both v7x TensorCores (megacore) get work;
    # extra steps are cheap (~0.35 us each) for a pure HBM-streaming op.
    while N * pl.cdiv(R, tile) < 4 and tile > 8:
        smaller = max(8, (tile // 2) // 8 * 8)
        if smaller == tile:
            break
        tile = smaller
    return tile


def attention_block_pallas(x_nchw, weight, bias, *, target_block_bytes=2 << 20):
    """x_nchw: (N, C, H, W); weight: (C, C, 1, 1); bias: (C,)."""
    N, C, H, W = x_nchw.shape
    S = H * W
    R = pl.cdiv(S, 128)
    S_pad = R * 128

    x3 = x_nchw.reshape(N, C, S)                 # free view, no transpose
    if S_pad != S:                               # pad spatial to a lane multiple
        x3 = jnp.pad(x3, ((0, 0), (0, 0), (0, S_pad - S)))
    x4 = x3.reshape(N, C, R, 128)                # spatial -> (sublane, lane)

    w2d = weight.reshape(C, C).astype(jnp.float32)   # [c_out, c_in] scalars in SMEM
    b1d = bias.astype(jnp.float32)

    itemsize = jnp.dtype(x_nchw.dtype).itemsize
    tile = _choose_tile_sub(N, R, C, itemsize, target_block_bytes)

    # Padding-aware VMEM budget: double-buffered input + output blocks plus
    # slack for the in-kernel f32 temporaries.  Kept under the v7x 64 MiB
    # physical / ~32-40 MiB practical per-core budget (128 MiB on v5e/v6e).
    sublane = {4: 8, 2: 16, 1: 32}.get(itemsize, 8)
    padded_tile = pl.cdiv(tile, sublane) * sublane
    padded_block_bytes = C * padded_tile * 128 * itemsize
    vmem_limit = int(min(40 << 20,
                         max(16 << 20, 4 * padded_block_bytes + (8 << 20))))

    grid = (N, pl.cdiv(R, tile))

    out4 = pl.pallas_call(
        _attention_block_kernel,
        out_shape=jax.ShapeDtypeStruct((N, C, R, 128), x_nchw.dtype),
        grid_spec=pltpu.PrefetchScalarGridSpec(
            num_scalar_prefetch=0,
            grid=grid,
            in_specs=[
                pl.BlockSpec((1, C, tile, 128), lambda n, s: (n, 0, s, 0)),  # x
                pl.BlockSpec(memory_space=pltpu.MemorySpace.SMEM),           # weight
                pl.BlockSpec(memory_space=pltpu.MemorySpace.SMEM),           # bias
            ],
            out_specs=pl.BlockSpec((1, C, tile, 128), lambda n, s: (n, 0, s, 0)),
        ),
        compiler_params=pltpu.CompilerParams(
            dimension_semantics=("parallel", "parallel"),
            vmem_limit_bytes=vmem_limit),
    )(x4, w2d, b1d)

    out3 = out4.reshape(N, C, S_pad)
    if S_pad != S:
        out3 = out3[:, :, :S]
    return out3.reshape(N, C, H, W)


def _reference(x_nchw, weight, bias):
    # Pure-JAX reference of the PyTorch forward (1x1 conv + sigmoid gate).
    w2d = weight.reshape(weight.shape[0], weight.shape[1])  # (C_out, C_in)
    att = jnp.einsum("nchw,oc->nohw", x_nchw, w2d) + bias[None, :, None, None]
    return x_nchw * jax.nn.sigmoid(att)


if __name__ == "__main__":
    key = jax.random.PRNGKey(0)
    k_x, k_w, k_b = jax.random.split(key, 3)

    N, C, H, W = 2, 4, 16, 16
    x = jax.random.normal(k_x, (N, C, H, W), dtype=jnp.float32)

    # Deterministic parameter init (mimics PyTorch Conv2d uniform bound 1/sqrt(fan_in)).
    fan_in = C * 1 * 1
    bound = 1.0 / (fan_in ** 0.5)
    weight = jax.random.uniform(k_w, (C, C, 1, 1), minval=-bound, maxval=bound,
                                dtype=jnp.float32)
    bias = jax.random.uniform(k_b, (C,), minval=-bound, maxval=bound,
                              dtype=jnp.float32)

    out = attention_block_pallas(x, weight, bias)
    out = jax.block_until_ready(out)

    ref = _reference(x, weight, bias)
    assert out.shape == x.shape and out.dtype == x.dtype
    assert jnp.allclose(out, ref, atol=1e-5, rtol=1e-5), "mismatch vs reference"

    print("KERNEL_OK")
</pallas_src>

<mosaic_0001>
module attributes {stable_mosaic.version = 11 : i64} {
  func.func @_attention_block_kernel(%arg0: i32, %arg1: i32, %arg2: memref<1x4x2x128xf32, #tpu.memory_space<vmem>>, %arg3: memref<4x4xf32, #tpu.memory_space<smem>>, %arg4: memref<4xf32, #tpu.memory_space<smem>>, %arg5: memref<1x4x2x128xf32, #tpu.memory_space<vmem>>) attributes {dimension_semantics = [#tpu.dimension_semantics<parallel>, #tpu.dimension_semantics<parallel>], iteration_bounds = array<i64: 2, 1>, scalar_prefetch = 0 : i64, scratch_operands = 0 : i64, tpu.core_type = #tpu.core_type<tc>, window_params = [{transform_indices = @transform_0, window_bounds = array<i64: 1, 4, 2, 128>}, {transform_indices = @transform_1, window_bounds = array<i64: 4, 4>}, {transform_indices = @transform_2, window_bounds = array<i64: 4>}, {transform_indices = @transform_3, window_bounds = array<i64: 1, 4, 2, 128>}]} {
    %c0 = arith.constant 0 : index
    %c0_0 = arith.constant 0 : index
    %c0_1 = arith.constant 0 : index
    %c0_2 = arith.constant 0 : index
    %0 = vector.load %arg2[%c0, %c0_0, %c0_1, %c0_2] : memref<1x4x2x128xf32, #tpu.memory_space<vmem>>, vector<1x1x2x128xf32>
    %1 = vector.shape_cast %0 : vector<1x1x2x128xf32> to vector<2x128xf32>
    %c0_3 = arith.constant 0 : index
    %c1 = arith.constant 1 : index
    %c0_4 = arith.constant 0 : index
    %c0_5 = arith.constant 0 : index
    %2 = vector.load %arg2[%c0_3, %c1, %c0_4, %c0_5] : memref<1x4x2x128xf32, #tpu.memory_space<vmem>>, vector<1x1x2x128xf32>
    %3 = vector.shape_cast %2 : vector<1x1x2x128xf32> to vector<2x128xf32>
    %c0_6 = arith.constant 0 : index
    %c2 = arith.constant 2 : index
    %c0_7 = arith.constant 0 : index
    %c0_8 = arith.constant 0 : index
    %4 = vector.load %arg2[%c0_6, %c2, %c0_7, %c0_8] : memref<1x4x2x128xf32, #tpu.memory_space<vmem>>, vector<1x1x2x128xf32>
    %5 = vector.shape_cast %4 : vector<1x1x2x128xf32> to vector<2x128xf32>
    %c0_9 = arith.constant 0 : index
    %c3 = arith.constant 3 : index
    %c0_10 = arith.constant 0 : index
    %c0_11 = arith.constant 0 : index
    %6 = vector.load %arg2[%c0_9, %c3, %c0_10, %c0_11] : memref<1x4x2x128xf32, #tpu.memory_space<vmem>>, vector<1x1x2x128xf32>
    %7 = vector.shape_cast %6 : vector<1x1x2x128xf32> to vector<2x128xf32>
    %c0_12 = arith.constant 0 : index
    %c0_13 = arith.constant 0 : index
    %8 = memref.load %arg3[%c0_12, %c0_13] : memref<4x4xf32, #tpu.memory_space<smem>>
    %9 = vector.broadcast %8 : f32 to vector<2x128xf32>
    %10 = arith.mulf %1, %9 : vector<2x128xf32>
    %c0_14 = arith.constant 0 : index
    %c1_15 = arith.constant 1 : index
    %11 = memref.load %arg3[%c0_14, %c1_15] : memref<4x4xf32, #tpu.memory_space<smem>>
    %12 = vector.broadcast %11 : f32 to vector<2x128xf32>
    %13 = arith.mulf %3, %12 : vector<2x128xf32>
    %14 = arith.addf %10, %13 : vector<2x128xf32>
    %c0_16 = arith.constant 0 : index
    %c2_17 = arith.constant 2 : index
    %15 = memref.load %arg3[%c0_16, %c2_17] : memref<4x4xf32, #tpu.memory_space<smem>>
    %16 = vector.broadcast %15 : f32 to vector<2x128xf32>
    %17 = arith.mulf %5, %16 : vector<2x128xf32>
    %18 = arith.addf %14, %17 : vector<2x128xf32>
    %c0_18 = arith.constant 0 : index
    %c3_19 = arith.constant 3 : index
    %19 = memref.load %arg3[%c0_18, %c3_19] : memref<4x4xf32, #tpu.memory_space<smem>>
    %20 = vector.broadcast %19 : f32 to vector<2x128xf32>
    %21 = arith.mulf %7, %20 : vector<2x128xf32>
    %22 = arith.addf %18, %21 : vector<2x128xf32>
    %c0_20 = arith.constant 0 : index
    %23 = memref.load %arg4[%c0_20] : memref<4xf32, #tpu.memory_space<smem>>
    %24 = vector.broadcast %23 : f32 to vector<2x128xf32>
    %25 = arith.addf %22, %24 : vector<2x128xf32>
    %26 = arith.negf %25 : vector<2x128xf32>
    %27 = math.exp %26 : vector<2x128xf32>
    %cst = arith.constant 1.000000e+00 : f32
    %28 = vector.broadcast %cst : f32 to vector<2x128xf32>
    %29 = arith.addf %28, %27 : vector<2x128xf32>
    %30 = arith.divf %28, %29 : vector<2x128xf32>
    %31 = arith.mulf %1, %30 : vector<2x128xf32>
    %c0_21 = arith.constant 0 : index
    %c0_22 = arith.constant 0 : index
    %c0_23 = arith.constant 0 : index
    %c0_24 = arith.constant 0 : index
    %32 = vector.load %arg5[%c0_21, %c0_22, %c0_23, %c0_24] : memref<1x4x2x128xf32, #tpu.memory_space<vmem>>, vector<1x1x2x128xf32>
    %33 = vector.shape_cast %32 : vector<1x1x2x128xf32> to vector<2x128xf32>
    %34 = vector.shape_cast %31 : vector<2x128xf32> to vector<1x1x2x128xf32>
    tpu.vector_store %arg5[%c0_21, %c0_22, %c0_23, %c0_24], %34 {strides = array<i32>} : memref<1x4x2x128xf32, #tpu.memory_space<vmem>>, vector<1x1x2x128xf32>,
    %c1_25 = arith.constant 1 : index
    %c0_26 = arith.constant 0 : index
    %35 = memref.load %arg3[%c1_25, %c0_26] : memref<4x4xf32, #tpu.memory_space<smem>>
    %36 = vector.broadcast %35 : f32 to vector<2x128xf32>
    %37 = arith.mulf %1, %36 : vector<2x128xf32>
    %c1_27 = arith.constant 1 : index
    %c1_28 = arith.constant 1 : index
    %38 = memref.load %arg3[%c1_27, %c1_28] : memref<4x4xf32, #tpu.memory_space<smem>>
    %39 = vector.broadcast %38 : f32 to vector<2x128xf32>
    %40 = arith.mulf %3, %39 : vector<2x128xf32>
    %41 = arith.addf %37, %40 : vector<2x128xf32>
    %c1_29 = arith.constant 1 : index
    %c2_30 = arith.constant 2 : index
    %42 = memref.load %arg3[%c1_29, %c2_30] : memref<4x4xf32, #tpu.memory_space<smem>>
    %43 = vector.broadcast %42 : f32 to vector<2x128xf32>
    %44 = arith.mulf %5, %43 : vector<2x128xf32>
    %45 = arith.addf %41, %44 : vector<2x128xf32>
    %c1_31 = arith.constant 1 : index
    %c3_32 = arith.constant 3 : index
    %46 = memref.load %arg3[%c1_31, %c3_32] : memref<4x4xf32, #tpu.memory_space<smem>>
    %47 = vector.broadcast %46 : f32 to vector<2x128xf32>
    %48 = arith.mulf %7, %47 : vector<2x128xf32>
    %49 = arith.addf %45, %48 : vector<2x128xf32>
    %c1_33 = arith.constant 1 : index
    %50 = memref.load %arg4[%c1_33] : memref<4xf32, #tpu.memory_space<smem>>
    %51 = vector.broadcast %50 : f32 to vector<2x128xf32>
    %52 = arith.addf %49, %51 : vector<2x128xf32>
    %53 = arith.negf %52 : vector<2x128xf32>
    %54 = math.exp %53 : vector<2x128xf32>
    %cst_34 = arith.constant 1.000000e+00 : f32
    %55 = vector.broadcast %cst_34 : f32 to vector<2x128xf32>
    %56 = arith.addf %55, %54 : vector<2x128xf32>
    %57 = arith.divf %55, %56 : vector<2x128xf32>
    %58 = arith.mulf %3, %57 : vector<2x128xf32>
    %c0_35 = arith.constant 0 : index
    %c1_36 = arith.constant 1 : index
    %c0_37 = arith.constant 0 : index
    %c0_38 = arith.constant 0 : index
    %59 = vector.load %arg5[%c0_35, %c1_36, %c0_37, %c0_38] : memref<1x4x2x128xf32, #tpu.memory_space<vmem>>, vector<1x1x2x128xf32>
    %60 = vector.shape_cast %59 : vector<1x1x2x128xf32> to vector<2x128xf32>
    %61 = vector.shape_cast %58 : vector<2x128xf32> to vector<1x1x2x128xf32>
    tpu.vector_store %arg5[%c0_35, %c1_36, %c0_37, %c0_38], %61 {strides = array<i32>} : memref<1x4x2x128xf32, #tpu.memory_space<vmem>>, vector<1x1x2x128xf32>,
    %c2_39 = arith.constant 2 : index
    %c0_40 = arith.constant 0 : index
    %62 = memref.load %arg3[%c2_39, %c0_40] : memref<4x4xf32, #tpu.memory_space<smem>>
    %63 = vector.broadcast %62 : f32 to vector<2x128xf32>
    %64 = arith.mulf %1, %63 : vector<2x128xf32>
    %c2_41 = arith.constant 2 : index
    %c1_42 = arith.constant 1 : index
    %65 = memref.load %arg3[%c2_41, %c1_42] : memref<4x4xf32, #tpu.memory_space<smem>>
    %66 = vector.broadcast %65 : f32 to vector<2x128xf32>
    %67 = arith.mulf %3, %66 : vector<2x128xf32>
    %68 = arith.addf %64, %67 : vector<2x128xf32>
    %c2_43 = arith.constant 2 : index
    %c2_44 = arith.constant 2 : index
    %69 = memref.load %arg3[%c2_43, %c2_44] : memref<4x4xf32, #tpu.memory_space<smem>>
    %70 = vector.broadcast %69 : f32 to vector<2x128xf32>
    %71 = arith.mulf %5, %70 : vector<2x128xf32>
    %72 = arith.addf %68, %71 : vector<2x128xf32>
    %c2_45 = arith.constant 2 : index
    %c3_46 = arith.constant 3 : index
    %73 = memref.load %arg3[%c2_45, %c3_46] : memref<4x4xf32, #tpu.memory_space<smem>>
    %74 = vector.broadcast %73 : f32 to vector<2x128xf32>
    %75 = arith.mulf %7, %74 : vector<2x128xf32>
    %76 = arith.addf %72, %75 : vector<2x128xf32>
    %c2_47 = arith.constant 2 : index
    %77 = memref.load %arg4[%c2_47] : memref<4xf32, #tpu.memory_space<smem>>
    %78 = vector.broadcast %77 : f32 to vector<2x128xf32>
    %79 = arith.addf %76, %78 : vector<2x128xf32>
    %80 = arith.negf %79 : vector<2x128xf32>
    %81 = math.exp %80 : vector<2x128xf32>
    %cst_48 = arith.constant 1.000000e+00 : f32
    %82 = vector.broadcast %cst_48 : f32 to vector<2x128xf32>
    %83 = arith.addf %82, %81 : vector<2x128xf32>
    %84 = arith.divf %82, %83 : vector<2x128xf32>
    %85 = arith.mulf %5, %84 : vector<2x128xf32>
    %c0_49 = arith.constant 0 : index
    %c2_50 = arith.constant 2 : index
    %c0_51 = arith.constant 0 : index
    %c0_52 = arith.constant 0 : index
    %86 = vector.load %arg5[%c0_49, %c2_50, %c0_51, %c0_52] : memref<1x4x2x128xf32, #tpu.memory_space<vmem>>, vector<1x1x2x128xf32>
    %87 = vector.shape_cast %86 : vector<1x1x2x128xf32> to vector<2x128xf32>
    %88 = vector.shape_cast %85 : vector<2x128xf32> to vector<1x1x2x128xf32>
    tpu.vector_store %arg5[%c0_49, %c2_50, %c0_51, %c0_52], %88 {strides = array<i32>} : memref<1x4x2x128xf32, #tpu.memory_space<vmem>>, vector<1x1x2x128xf32>,
    %c3_53 = arith.constant 3 : index
    %c0_54 = arith.constant 0 : index
    %89 = memref.load %arg3[%c3_53, %c0_54] : memref<4x4xf32, #tpu.memory_space<smem>>
    %90 = vector.broadcast %89 : f32 to vector<2x128xf32>
    %91 = arith.mulf %1, %90 : vector<2x128xf32>
    %c3_55 = arith.constant 3 : index
    %c1_56 = arith.constant 1 : index
    %92 = memref.load %arg3[%c3_55, %c1_56] : memref<4x4xf32, #tpu.memory_space<smem>>
    %93 = vector.broadcast %92 : f32 to vector<2x128xf32>
    %94 = arith.mulf %3, %93 : vector<2x128xf32>
    %95 = arith.addf %91, %94 : vector<2x128xf32>
    %c3_57 = arith.constant 3 : index
    %c2_58 = arith.constant 2 : index
    %96 = memref.load %arg3[%c3_57, %c2_58] : memref<4x4xf32, #tpu.memory_space<smem>>
    %97 = vector.broadcast %96 : f32 to vector<2x128xf32>
    %98 = arith.mulf %5, %97 : vector<2x128xf32>
    %99 = arith.addf %95, %98 : vector<2x128xf32>
    %c3_59 = arith.constant 3 : index
    %c3_60 = arith.constant 3 : index
    %100 = memref.load %arg3[%c3_59, %c3_60] : memref<4x4xf32, #tpu.memory_space<smem>>
    %101 = vector.broadcast %100 : f32 to vector<2x128xf32>
    %102 = arith.mulf %7, %101 : vector<2x128xf32>
    %103 = arith.addf %99, %102 : vector<2x128xf32>
    %c3_61 = arith.constant 3 : index
    %104 = memref.load %arg4[%c3_61] : memref<4xf32, #tpu.memory_space<smem>>
    %105 = vector.broadcast %104 : f32 to vector<2x128xf32>
    %106 = arith.addf %103, %105 : vector<2x128xf32>
    %107 = arith.negf %106 : vector<2x128xf32>
    %108 = math.exp %107 : vector<2x128xf32>
    %cst_62 = arith.constant 1.000000e+00 : f32
    %109 = vector.broadcast %cst_62 : f32 to vector<2x128xf32>
    %110 = arith.addf %109, %108 : vector<2x128xf32>
    %111 = arith.divf %109, %110 : vector<2x128xf32>
    %112 = arith.mulf %7, %111 : vector<2x128xf32>
    %c0_63 = arith.constant 0 : index
    %c3_64 = arith.constant 3 : index
    %c0_65 = arith.constant 0 : index
    %c0_66 = arith.constant 0 : index
    %113 = vector.load %arg5[%c0_63, %c3_64, %c0_65, %c0_66] : memref<1x4x2x128xf32, #tpu.memory_space<vmem>>, vector<1x1x2x128xf32>
    %114 = vector.shape_cast %113 : vector<1x1x2x128xf32> to vector<2x128xf32>
    %115 = vector.shape_cast %112 : vector<2x128xf32> to vector<1x1x2x128xf32>
    tpu.vector_store %arg5[%c0_63, %c3_64, %c0_65, %c0_66], %115 {strides = array<i32>} : memref<1x4x2x128xf32, #tpu.memory_space<vmem>>, vector<1x1x2x128xf32>,
    return
  }
  func.func @transform_0(%arg0: i32, %arg1: i32) -> (i32, i32, i32, i32) {
    %c0_i32 = arith.constant 0 : i32
    %c0_i32_0 = arith.constant 0 : i32
    %c0_i32_1 = arith.constant 0 : i32
    return %arg0, %c0_i32, %arg1, %c0_i32_0 : i32, i32, i32, i32
  }
  func.func @transform_1(%arg0: i32, %arg1: i32) -> (i32, i32) {
    %c0_i32 = arith.constant 0 : i32
    %c0_i32_0 = arith.constant 0 : i32
    %c0_i32_1 = arith.constant 0 : i32
    return %c0_i32, %c0_i32_0 : i32, i32
  }
  func.func @transform_2(%arg0: i32, %arg1: i32) -> i32 {
    %c0_i32 = arith.constant 0 : i32
    %c0_i32_0 = arith.constant 0 : i32
    return %c0_i32 : i32
  }
  func.func @transform_3(%arg0: i32, %arg1: i32) -> (i32, i32, i32, i32) {
    %c0_i32 = arith.constant 0 : i32
    %c0_i32_0 = arith.constant 0 : i32
    %c0_i32_1 = arith.constant 0 : i32
    return %arg0, %c0_i32, %arg1, %c0_i32_0 : i32, i32, i32, i32
  }
}

</mosaic_0001>

<llo_original>
// kernel: tpu_custom_call.1
$region0: #{tpu_custom_call.1}
  #allocation0 [shape = 'u32[]', space=smem, size = 0x4, offset = 0x4, fixed_abs, tag = 'smem constant byte address 0x4 - core index']
  #allocation1 [shape = 'u32[144,128]{1,0:T(1,128)}', space=vmem, size = 0x12000, scoped, tag = 'internal scratch']
  %s0 = inlined_call_operand.hbm [shape: f32[2,4,2,128], index: 0, kind: input, shape index: {}]
  %s1 = inlined_call_operand.hbm [shape: f32[4,4], index: 1, kind: input, shape index: {}]
  %s2 = inlined_call_operand.vmem [shape: f32[4], index: 2, kind: input, shape index: {}]
  %s3 = inlined_call_operand.hbm [shape: f32[2,4,2,128], index: 3, kind: output, shape index: {}]
  %s4 = sld [smem:[#allocation0]]
  $region57: #{tpu_custom_call.1} parent=0
    _
  %s6 = ssub.s32 1, %s4
  %s7 = scalar_select 0, %s6, %s4
  $region1: #{tpu_custom_call.1} parent=0
    #allocation2 [shape = 'u8[8192]{0}', space=vmem, size = 0x2000, scoped, tag = 'input window, operand 0']
    #allocation3 [shape = 's32[2]{0}', space=sflag, size = 0x8, scoped, tag = 'scoped memory for tpu_custom_call.1']
    #allocation4 [shape = 's32[2]{0}', space=sflag, size = 0x8, scoped, tag = 'scoped memory for tpu_custom_call.1']
    #allocation5 [shape = 's32[2]{0}', space=sflag, size = 0x8, scoped, tag = 'scoped memory for tpu_custom_call.1']
    #allocation6 [shape = 's32[2]{0}', space=sflag, size = 0x8, scoped, tag = 'scoped memory for tpu_custom_call.1']
    #allocation7 [shape = 'u8[2048]{0}', space=smem, size = 0x800, scoped, tag = 'input window, operand 1, single buffered']
    #allocation8 [shape = 'u8[512]{0}', space=smem, size = 0x200, scoped, tag = 'input window, operand 2, single buffered']
    #allocation9 [shape = 'u8[8192]{0}', space=vmem, size = 0x2000, scoped, tag = 'output window, operand 0']
    %8 = vsyncpa [#allocation3], 0
    %s9 = scalar_lea.sflag [#allocation3], 1
    %10 = vsyncpa %s9, 0
    %11 = vsyncpa [#allocation5], 0
    %12 = vsyncpa [#allocation6], 0
    %13 = vsyncpa [#allocation4], 0
    %s14 = scalar_lea.sflag [#allocation4], 1
    %15 = vsyncpa %s14, 0
    loop: start=0, step=1, limit=4
    $region2: #{tpu_custom_call.1} parent=1 // loop_pre_header
      _
    $region3: #{tpu_custom_call.1} parent=1 // loop_header
      %s17 = sphi 0, %s21
      %p18 = scmp.ge.s32.totalorder %s17, 4
      %s24 = sphi 0, %s36
      %s25 = sphi 0, %s32
      %s26 = sphi 0, %s24
      %s27 = sphi 0, %s25
      %s28 = sphi 0, %s26
      %s29 = sphi 0, %s27
      %s41 = sphi 0, %s43
      %s44 = sphi 0, %s41
      %s45 = sphi 0, %s44
      %s61 = sphi 0, %s45
      %s65 = sphi 0, %s65
      %s67 = sphi 0, %s65
      %s68 = sphi 0, %s67
      %s82 = sphi 0, %s68
      %s86 = sphi 0, %s86
      %s88 = sphi 0, %s86
      %s89 = sphi 0, %s88
      %s103 = sphi 0, %s89
      %s111 = sphi 0, %s113
      %s114 = sphi 0, %s111
      %s115 = sphi 0, %s114
      %s131 = sphi 0, %s115
    $region4: #{tpu_custom_call.1} parent=1 // loop_header_branch
      %20 = sbr.rel (%p18) target = $region8
    $region5: #{tpu_custom_call.1} parent=1 // loop_body
      %s22 = ssub.s32 %s17, 1
      %s23 = ssub.s32 %s17, 2
      %s30 = sadd.s32 1, %s25
      %p31 = scmp.ge.s32.totalorder %s30, 1
      %s32 = scalar_select %p31, 0, %s30
      %s33 = sadd.s32 1, %s24
      %s34 = scalar_select %p31, %s33, %s24
      %p35 = scmp.ge.s32.totalorder %s34, 2
      %s36 = scalar_select %p35, 0, %s34
      %s37 = ssub.s32 %s24, %s36
      %s38 = ssub.s32 %s25, %s32
      %s39 = sor.u32 %s37, %s38
      %p40 = scmp.eq.s32.totalorder %s39, 0
      %s42 = sadd.s32 %s41, 1
      %s43 = scalar_select %p40, %s41, %s42
      %p46 = pneg %p40
      %p47 = scmp.eq.s32.totalorder %s17, 1
      %p48 = por %p46, %p47
      %p49 = scmp.ne.s32.totalorder %s41, %s44
      %p50 = scmp.eq.s32.totalorder %s17, 0
      %p51 = por %p49, %p50
      %p52 = scmp.ne.s32.totalorder %s41, %s44
      %p53 = scmp.eq.s32.totalorder %s22, 1
      %p54 = por %p52, %p53
      %p55 = scmp.ne.s32.totalorder %s44, %s45
      %p56 = scmp.eq.s32.totalorder %s22, 0
      %p57 = por %p55, %p56
      %p58 = scmp.ne.s32.totalorder %s44, %s45
      %p59 = scmp.eq.s32.totalorder %s23, 1
      %p60 = por %p58, %p59
      %p62 = scmp.ne.s32.totalorder %s45, %s61
      %p63 = scmp.eq.s32.totalorder %s23, 0
      %p64 = por %p62, %p63
      %s66 = sadd.s32 %s65, 1
      %p69 = scmp.eq.s32.totalorder %s17, 1
      %p70 = scmp.ne.s32.totalorder %s65, %s67
      %p71 = scmp.eq.s32.totalorder %s17, 0
      %p72 = por %p70, %p71
      %p73 = scmp.ne.s32.totalorder %s65, %s67
      %p74 = scmp.eq.s32.totalorder %s22, 1
      %p75 = por %p73, %p74
      %p76 = scmp.ne.s32.totalorder %s67, %s68
      %p77 = scmp.eq.s32.totalorder %s22, 0
      %p78 = por %p76, %p77
      %p79 = scmp.ne.s32.totalorder %s67, %s68
      %p80 = scmp.eq.s32.totalorder %s23, 1
      %p81 = por %p79, %p80
      %p83 = scmp.ne.s32.totalorder %s68, %s82
      %p84 = scmp.eq.s32.totalorder %s23, 0
      %p85 = por %p83, %p84
      %s87 = sadd.s32 %s86, 1
      %p90 = scmp.eq.s32.totalorder %s17, 1
      %p91 = scmp.ne.s32.totalorder %s86, %s88
      %p92 = scmp.eq.s32.totalorder %s17, 0
      %p93 = por %p91, %p92
      %p94 = scmp.ne.s32.totalorder %s86, %s88
      %p95 = scmp.eq.s32.totalorder %s22, 1
      %p96 = por %p94, %p95
      %p97 = scmp.ne.s32.totalorder %s88, %s89
      %p98 = scmp.eq.s32.totalorder %s22, 0
      %p99 = por %p97, %p98
      %p100 = scmp.ne.s32.totalorder %s88, %s89
      %p101 = scmp.eq.s32.totalorder %s23, 1
      %p102 = por %p100, %p101
      %p104 = scmp.ne.s32.totalorder %s89, %s103
      %p105 = scmp.eq.s32.totalorder %s23, 0
      %p106 = por %p104, %p105
      %s107 = ssub.s32 %s24, %s36
      %s108 = ssub.s32 %s25, %s32
      %s109 = sor.u32 %s107, %s108
      %p110 = scmp.eq.s32.totalorder %s109, 0
      %s112 = sadd.s32 %s111, 1
      %s113 = scalar_select %p110, %s111, %s112
      %p116 = pneg %p110
      %p117 = scmp.eq.s32.totalorder %s17, 1
      %p118 = por %p116, %p117
      %p119 = scmp.ne.s32.totalorder %s111, %s114
      %p120 = scmp.eq.s32.totalorder %s17, 0
      %p121 = por %p119, %p120
      %p122 = scmp.ne.s32.totalorder %s111, %s114
      %p123 = scmp.eq.s32.totalorder %s22, 1
      %p124 = por %p122, %p123
      %p125 = scmp.ne.s32.totalorder %s114, %s115
      %p126 = scmp.eq.s32.totalorder %s22, 0
      %p127 = por %p125, %p126
      %p128 = scmp.ne.s32.totalorder %s114, %s115
      %p129 = scmp.eq.s32.totalorder %s23, 1
      %p130 = por %p128, %p129
      %p132 = scmp.ne.s32.totalorder %s115, %s131
      %p133 = scmp.eq.s32.totalorder %s23, 0
      %p134 = por %p132, %p133
      %p135 = scmp.le.s32.totalorder 1, %s17
      %p136 = scmp.lt.s32.totalorder %s17, 3
      %p137 = pnand %p135, %p136
      %p138 = pneg %p137
      // Predicated region
      $region9: #{tpu_custom_call.1} parent=5 // pred_check
        _
      $region10: #{tpu_custom_call.1} parent=5 // pred_check_branch
        %140 = sbr.rel (%p137) target = $region12
      $region11: #{tpu_custom_call.1} parent=5 // pred_region
        %s141 = ssub.s32 %s17, 1
        // Predicated region
        $region13: #{tpu_custom_call.1} parent=11 // pred_check
          %p142 = pneg %p78
        $region14: #{tpu_custom_call.1} parent=11 // pred_check_branch
          %144 = sbr.rel (%p142) target = $region16
        $region15: #{tpu_custom_call.1} parent=11 // pred_region
          %s146 = ssub.s32 64, 64
          %147 = vsyncadd [#allocation5], %s146
          %150 = dma.hbm_to_smem %s1, 64, [#allocation7], [#allocation5]
        $region16: #{tpu_custom_call.1} parent=11 // pred_fallthru
          _
        // Predicated region
        $region17: #{tpu_custom_call.1} parent=11 // pred_check
          %p151 = pneg %p99
        $region18: #{tpu_custom_call.1} parent=11 // pred_check_branch
          %153 = sbr.rel (%p151) target = $region20
        $region19: #{tpu_custom_call.1} parent=11 // pred_region
          %s155 = ssub.s32 16, 16
          %156 = vsyncadd [#allocation6], %s155
          %s158 = sshll.u32 %s2, 4
          %s159 = int_to_ptr.vmem [resolvable:$true] %s158
          %161 = dma.vmem_to_smem %s159, 16, [#allocation8], [#allocation6]
        $region20: #{tpu_custom_call.1} parent=11 // pred_fallthru
          _
      $region12: #{tpu_custom_call.1} parent=5 // pred_fallthru
        _
      %p162 = scmp.lt.s32.totalorder %s17, 2
      // Predicated region
      $region21: #{tpu_custom_call.1} parent=5 // pred_check
        %p163 = pneg %p162
      $region22: #{tpu_custom_call.1} parent=5 // pred_check_branch
        %165 = sbr.rel (%p163) target = $region24
      $region23: #{tpu_custom_call.1} parent=5 // pred_region
        // Predicated region
        $region25: #{tpu_custom_call.1} parent=23 // pred_check
          %p166 = pneg %p51
        $region26: #{tpu_custom_call.1} parent=23 // pred_check_branch
          %168 = sbr.rel (%p166) target = $region28
        $region27: #{tpu_custom_call.1} parent=23 // pred_region
          %s169 = sand.u32 %s41, 1
          %s170 = scalar_lea.sflag [#allocation3], %s169
          %s171 = sand.u32 %s41, 1
          %s172 = smul.addr %s171, 8
          %s173 = scalar_lea.vmem [#allocation2], %s172
          %s175 = ssub.s32 128, 128
          %176 = vsyncadd %s170, %s175
          %s177 = smul.addr %s24, 4
          %s178 = sadd.s32 %s25, %s177
          %s179 = smul.addr %s178, 32
          %s180 = scalar_lea.hbm %s0, %s179
          %s181 = sshll.u32 %s173, 4
          %s182 = int_to_ptr.vmem [resolvable:$true] %s181
          %187 = dma.hbm_to_vmem [thread:$0]  %s180, 128, %s182, %s170, 32, 32, 2
        $region28: #{tpu_custom_call.1} parent=23 // pred_fallthru
          _
      $region24: #{tpu_custom_call.1} parent=5 // pred_fallthru
        _
      %p188 = scmp.le.s32.totalorder 1, %s17
      %p189 = scmp.lt.s32.totalorder %s17, 3
      %p190 = pnand %p188, %p189
      %p191 = pneg %p190
      // Predicated region
      $region29: #{tpu_custom_call.1} parent=5 // pred_check
        _
      $region30: #{tpu_custom_call.1} parent=5 // pred_check_branch
        %193 = sbr.rel (%p190) target = $region32
      $region31: #{tpu_custom_call.1} parent=5 // pred_region
        %s194 = ssub.s32 %s17, 1
        %s195 = sand.u32 %s44, 1
        %s196 = scalar_lea.sflag [#allocation3], %s195
        %s197 = sand.u32 %s44, 1
        %s198 = smul.addr %s197, 8
        %s199 = scalar_lea.vmem [#allocation2], %s198
        // Predicated region
        $region33: #{tpu_custom_call.1} parent=31 // pred_check
          %p200 = pneg %p57
        $region34: #{tpu_custom_call.1} parent=31 // pred_check_branch
          %202 = sbr.rel (%p200) target = $region36
        $region35: #{tpu_custom_call.1} parent=31 // pred_region
          %203 = dma.done %s196, 128
        $region36: #{tpu_custom_call.1} parent=31 // pred_fallthru
          _
        // Predicated region
        $region37: #{tpu_custom_call.1} parent=31 // pred_check
          %p204 = pneg %p78
        $region38: #{tpu_custom_call.1} parent=31 // pred_check_branch
          %206 = sbr.rel (%p204) target = $region40
        $region39: #{tpu_custom_call.1} parent=31 // pred_region
          %207 = dma.done [#allocation5], 64
        $region40: #{tpu_custom_call.1} parent=31 // pred_fallthru
          _
        // Predicated region
        $region41: #{tpu_custom_call.1} parent=31 // pred_check
          %p208 = pneg %p99
        $region42: #{tpu_custom_call.1} parent=31 // pred_check_branch
          %210 = sbr.rel (%p208) target = $region44
        $region43: #{tpu_custom_call.1} parent=31 // pred_region
          %211 = dma.done [#allocation6], 16
        $region44: #{tpu_custom_call.1} parent=31 // pred_fallthru
          _
        %212 = sfence
        %s213 = sand.u32 %s44, 1
        %s214 = scalar_lea.sflag [#allocation3], %s213
        %s215 = sand.u32 %s44, 1
        %s216 = smul.addr %s215, 8
        %s217 = scalar_lea.vmem [#allocation2], %s216
        %p218 = pneg %p57
        %p219 = pneg %p54
        %p220 = pneg %p78
        %p221 = pneg %p75
        %p222 = pneg %p99
        %p223 = pneg %p96
        %p224 = pneg %p127
        %p225 = pneg %p124
        %s226 = sand.u32 %s114, 1
        %s227 = scalar_lea.sflag [#allocation4], %s226
        %s228 = sand.u32 %s114, 1
        %s229 = smul.addr %s228, 8
        %s230 = scalar_lea.vmem [#allocation9], %s229
        %v231 = vld [vmem:[%s199] sm:$0x3]
        %s232 = scalar_lea.vmem %s199, 2 [#allocation2]
        %v233 = vld [vmem:[%s232] sm:$0x3]
        %s234 = scalar_lea.vmem %s199, 4 [#allocation2]
        %v235 = vld [vmem:[%s234] sm:$0x3]
        %s236 = scalar_lea.vmem %s199, 6 [#allocation2]
        %v237 = vld [vmem:[%s236] sm:$0x3]
        %s238 = sld [smem:[#allocation7]]
        %v239 = vstv %s238
        %v240 = vmul.f32 %v231, %v239
        %s241 = sld [smem:[#allocation7 + $0x1]]
        %v242 = vstv %s241
        %v243 = vmul.f32 %v233, %v242
        %v244 = vadd.f32 %v240, %v243
        %s245 = sld [smem:[#allocation7 + $0x2]]
        %v246 = vstv %s245
        %v247 = vmul.f32 %v235, %v246
        %v248 = vadd.f32 %v244, %v247
        %s249 = sld [smem:[#allocation7 + $0x3]]
        %v250 = vstv %s249
        %v251 = vmul.f32 %v237, %v250
        %v252 = vadd.f32 %v248, %v251
        %s253 = sld [smem:[#allocation8]]
        %v254 = vstv %s253
        %v255 = vadd.f32 %v252, %v254
        %v256 = vxor.u32 %v255, 2147483648
        %v257 = vmul.f32 %v256, 1.442695
        %v258 = vpow.pop %v257
        %v259 = vadd.f32 %v258, 1.0
        %v260 = vrcp.pop %v259
        %v261 = vmul.f32 1.0, %v260
        %v262 = vmul.f32 %v231, %v261
        %263 = vst [vmem:[%s230] sm:$0x3] %v262
        %s264 = sld [smem:[#allocation7 + $0x80]]
        %v265 = vstv %s264
        %v266 = vmul.f32 %v231, %v265
        %s267 = sld [smem:[#allocation7 + $0x81]]
        %v268 = vstv %s267
        %v269 = vmul.f32 %v233, %v268
        %v270 = vadd.f32 %v266, %v269
        %s271 = sld [smem:[#allocation7 + $0x82]]
        %v272 = vstv %s271
        %v273 = vmul.f32 %v235, %v272
        %v274 = vadd.f32 %v270, %v273
        %s275 = sld [smem:[#allocation7 + $0x83]]
        %v276 = vstv %s275
        %v277 = vmul.f32 %v237, %v276
        %v278 = vadd.f32 %v274, %v277
        %s279 = sld [smem:[#allocation8 + $0x1]]
        %v280 = vstv %s279
        %v281 = vadd.f32 %v278, %v280
        %v282 = vxor.u32 %v281, 2147483648
        %v283 = vmul.f32 %v282, 1.442695
        %v284 = vpow.pop %v283
        %v285 = vadd.f32 %v284, 1.0
        %v286 = vrcp.pop %v285
        %v287 = vmul.f32 1.0, %v286
        %v288 = vmul.f32 %v233, %v287
        %s289 = scalar_lea.vmem %s230, 2 [#allocation9]
        %290 = vst [vmem:[%s289] sm:$0x3] %v288
        %s291 = sld [smem:[#allocation7 + $0x100]]
        %v292 = vstv %s291
        %v293 = vmul.f32 %v231, %v292
        %s294 = sld [smem:[#allocation7 + $0x101]]
        %v295 = vstv %s294
        %v296 = vmul.f32 %v233, %v295
        %v297 = vadd.f32 %v293, %v296
        %s298 = sld [smem:[#allocation7 + $0x102]]
        %v299 = vstv %s298
        %v300 = vmul.f32 %v235, %v299
        %v301 = vadd.f32 %v297, %v300
        %s302 = sld [smem:[#allocation7 + $0x103]]
        %v303 = vstv %s302
        %v304 = vmul.f32 %v237, %v303
        %v305 = vadd.f32 %v301, %v304
        %s306 = sld [smem:[#allocation8 + $0x2]]
        %v307 = vstv %s306
        %v308 = vadd.f32 %v305, %v307
        %v309 = vxor.u32 %v308, 2147483648
        %v310 = vmul.f32 %v309, 1.442695
        %v311 = vpow.pop %v310
        %v312 = vadd.f32 %v311, 1.0
        %v313 = vrcp.pop %v312
        %v314 = vmul.f32 1.0, %v313
        %v315 = vmul.f32 %v235, %v314
        %s316 = scalar_lea.vmem %s230, 4 [#allocation9]
        %317 = vst [vmem:[%s316] sm:$0x3] %v315
        %s318 = sld [smem:[#allocation7 + $0x180]]
        %v319 = vstv %s318
        %v320 = vmul.f32 %v231, %v319
        %s321 = sld [smem:[#allocation7 + $0x181]]
        %v322 = vstv %s321
        %v323 = vmul.f32 %v233, %v322
        %v324 = vadd.f32 %v320, %v323
        %s325 = sld [smem:[#allocation7 + $0x182]]
        %v326 = vstv %s325
        %v327 = vmul.f32 %v235, %v326
        %v328 = vadd.f32 %v324, %v327
        %s329 = sld [smem:[#allocation7 + $0x183]]
        %v330 = vstv %s329
        %v331 = vmul.f32 %v237, %v330
        %v332 = vadd.f32 %v328, %v331
        %s333 = sld [smem:[#allocation8 + $0x3]]
        %v334 = vstv %s333
        %v335 = vadd.f32 %v332, %v334
        %v336 = vxor.u32 %v335, 2147483648
        %v337 = vmul.f32 %v336, 1.442695
        %v338 = vpow.pop %v337
        %v339 = vadd.f32 %v338, 1.0
        %v340 = vrcp.pop %v339
        %v341 = vmul.f32 1.0, %v340
        %v342 = vmul.f32 %v237, %v341
        %s343 = scalar_lea.vmem %s230, 6 [#allocation9]
        %344 = vst [vmem:[%s343] sm:$0x3] %v342
        %s345 = sand.u32 %s114, 1
        %s346 = scalar_lea.sflag [#allocation4], %s345
        %s347 = sand.u32 %s114, 1
        %s348 = smul.addr %s347, 8
        %s349 = scalar_lea.vmem [#allocation9], %s348
        // Predicated region
        $region45: #{tpu_custom_call.1} parent=31 // pred_check
          %p350 = pneg %p124
        $region46: #{tpu_custom_call.1} parent=31 // pred_check_branch
          %352 = sbr.rel (%p350) target = $region48
        $region47: #{tpu_custom_call.1} parent=31 // pred_region
          %s354 = ssub.s32 128, 128
          %355 = vsyncadd %s346, %s354
          %s356 = smul.addr %s26, 4
          %s357 = sadd.s32 %s27, %s356
          %s358 = smul.addr %s357, 32
          %s359 = scalar_lea.hbm %s3, %s358
          %s360 = sshll.u32 %s349, 4
          %s361 = int_to_ptr.vmem [resolvable:$true] %s360
          %366 = dma.vmem_to_hbm [thread:$0]  %s361, 128, %s359, %s346, 32, 32, 2
        $region48: #{tpu_custom_call.1} parent=31 // pred_fallthru
          _
      $region32: #{tpu_custom_call.1} parent=5 // pred_fallthru
        _
      %p367 = scmp.le.s32.totalorder 2, %s17
      // Predicated region
      $region49: #{tpu_custom_call.1} parent=5 // pred_check
        %p368 = pneg %p367
      $region50: #{tpu_custom_call.1} parent=5 // pred_check_branch
        %370 = sbr.rel (%p368) target = $region52
      $region51: #{tpu_custom_call.1} parent=5 // pred_region
        %s371 = ssub.s32 %s17, 2
        // Predicated region
        $region53: #{tpu_custom_call.1} parent=51 // pred_check
          %p372 = pneg %p130
        $region54: #{tpu_custom_call.1} parent=51 // pred_check_branch
          %374 = sbr.rel (%p372) target = $region56
        $region55: #{tpu_custom_call.1} parent=51 // pred_region
          %s375 = sand.u32 %s115, 1
          %s376 = scalar_lea.sflag [#allocation4], %s375
          %s377 = sand.u32 %s115, 1
          %s378 = smul.addr %s377, 8
          %s379 = scalar_lea.vmem [#allocation9], %s378
          %380 = dma.done %s376, 128
        $region56: #{tpu_custom_call.1} parent=51 // pred_fallthru
          _
      $region52: #{tpu_custom_call.1} parent=5 // pred_fallthru
        _
    $region6: #{tpu_custom_call.1} parent=1 // loop_footer
      %s21 = sadd.s32 1, %s17
    $region7: #{tpu_custom_call.1} parent=1 // loop_footer_branch
      %16 = sbr.rel target = $region3
    $region8: #{tpu_custom_call.1} parent=1 // loop_exit
      _
    %381 = vsyncpa [#allocation3], 1
    %s382 = scalar_lea.sflag [#allocation3], 1
    %383 = vsyncpa %s382, 1
    %384 = vsyncpa [#allocation4], 1
    %s385 = scalar_lea.sflag [#allocation4], 1
    %386 = vsyncpa %s385, 1
    %387 = vsyncpa [#allocation5], 1
    %s388 = scalar_lea.sflag [#allocation5], 1
    %389 = vsyncpa %s388, 1
    %390 = vsyncpa [#allocation6], 1
    %s391 = scalar_lea.sflag [#allocation6], 1
    %392 = vsyncpa %s391, 1

</llo_original>
